<compile_context>
chip_gen: v7x
topology: tpu7x:2x2x1
jax: 0.10.0
libtpu: 0.0.40
codegen_flags: <defaults>
</compile_context>

<pallas_src>
import functools
import math

import jax
import jax.numpy as jnp
from jax.experimental import pallas as pl
from jax.experimental.pallas import tpu as pltpu


def _round_up(n, m):
    return ((n + m - 1) // m) * m


def _linear_policy_kernel(x_ref, centers_ref, bias_ref, wT_ref, o_ref, *,
                          logit_scale, valid_out, mxu_dtype):
    # x_ref:       (TB, input_size)        batch tile (walks with grid)
    # centers_ref: (input_size, feature_dim)   VMEM-resident across grid steps
    # bias_ref:    (1, feature_dim)  f32       VMEM-resident
    # wT_ref:      (feature_dim, n_pad)        pre-transposed, pre-scaled, padded
    # o_ref:       (TB, n_pad)                 lane-dense output tile
    x = x_ref[...]
    c = centers_ref[...]
    if mxu_dtype is not None:            # bf16 MXU operands (v6e / v7x)
        x = x.astype(mxu_dtype)
        c = c.astype(mxu_dtype)
    proj = jnp.dot(x, c, preferred_element_type=jnp.float32)        # MXU, f32 acc

    feat = jnp.cos(proj + bias_ref[...])                            # f32 elementwise
    # (1/sqrt(feature_dim) is already folded into wT at param-prep time.)

    w = wT_ref[...]
    if mxu_dtype is not None:
        feat = feat.astype(mxu_dtype)
        w = w.astype(mxu_dtype)
    logits = jnp.dot(feat, w, preferred_element_type=jnp.float32)   # MXU, f32 acc
    logits = logits * logit_scale

    if valid_out < logits.shape[-1]:     # mask lane-padding columns (static check)
        col = jax.lax.broadcasted_iota(jnp.int32, logits.shape, 1)
        logits = jnp.where(col < valid_out, logits, -1e30)

    # row-wise softmax, all in f32
    m = jnp.max(logits, axis=-1, keepdims=True)
    e = jnp.exp(logits - m)
    denom = jnp.sum(e, axis=-1, keepdims=True)
    o_ref[...] = (e / denom).astype(o_ref.dtype)


def prepare_params(centers, bias, weight, *, param_dtype=jnp.float32, lane_pad=128):
    """One-time parameter prep: fold 1/sqrt(feature_dim) into W, transpose it,
    pad its output dim to a lane-dense multiple of 128, reshape bias to 2D.
    Do this ONCE, not per forward call."""
    input_size, feature_dim = centers.shape
    output_size = weight.shape[0]
    inv_sqrt_fd = 1.0 / math.sqrt(feature_dim)

    n_pad = _round_up(output_size, lane_pad)
    wT = (weight.T * inv_sqrt_fd).astype(jnp.float32)          # (feature_dim, out)
    if n_pad != output_size:
        wT = jnp.pad(wT, ((0, 0), (0, n_pad - output_size)))   # zero pad lanes

    bias2d = bias.reshape(1, feature_dim).astype(jnp.float32)  # elementwise stays f32
    return centers.astype(param_dtype), bias2d, wT.astype(param_dtype)


def linear_policy_forward(x, centers, bias2d, wT_eff, *, output_size,
                          temperature=1.0, steps=1, mxu_dtype=None,
                          block_batch=128):
    """x: (B, input_size); centers/bias2d/wT_eff come from prepare_params()."""
    B, input_size = x.shape
    feature_dim = centers.shape[1]
    n_pad = wT_eff.shape[1]

    # Batch tiling: big batches get 128-row blocks; tiny batches get one
    # sublane-aligned block.  Pad rows (zeros) and slice them off afterwards.
    tb = block_batch if B >= block_batch else _round_up(max(B, 1), 8)
    b_pad = _round_up(B, tb)
    if b_pad != B:
        x = jnp.pad(x, ((0, b_pad - B), (0, 0)))

    logit_scale = 1.0 / (temperature * math.sqrt(steps))
    kernel = functools.partial(_linear_policy_kernel,
                               logit_scale=logit_scale,
                               valid_out=output_size,
                               mxu_dtype=mxu_dtype)

    out = pl.pallas_call(
        kernel,
        out_shape=jax.ShapeDtypeStruct((b_pad, n_pad), jnp.float32),
        grid=(b_pad // tb,),
        in_specs=[
            pl.BlockSpec((tb, input_size), lambda i: (i, 0)),          # x tile walks
            pl.BlockSpec((input_size, feature_dim), lambda i: (0, 0)),  # resident
            pl.BlockSpec((1, feature_dim), lambda i: (0, 0)),           # resident
            pl.BlockSpec((feature_dim, n_pad), lambda i: (0, 0)),       # resident
        ],
        out_specs=pl.BlockSpec((tb, n_pad), lambda i: (i, 0)),
        compiler_params=pltpu.CompilerParams(
            dimension_semantics=("parallel",)),   # shard batch across TCs on v7x
    )(x, centers, bias2d, wT_eff)

    return out[:B, :output_size]


def make_raw_params(key, input_size, feature_dim, output_size, feature_bd):
    """Mirrors the torch module's init (feature_mapping + nn.Linear no-bias)."""
    kc, kb, kw = jax.random.split(key, 3)
    centers = jax.random.normal(kc, (input_size, feature_dim), jnp.float32) / feature_bd
    centers = centers.at[:, 0].set(0.0)             # centers[:, 0] *= 0
    bias = jax.random.uniform(kb, (feature_dim,), jnp.float32) * 2.0 * jnp.pi
    bias = bias.at[0].set(0.0)                      # bias[0] *= 0
    k = 1.0 / math.sqrt(feature_dim)                # nn.Linear default U(-k, k)
    weight = jax.random.uniform(kw, (output_size, feature_dim), jnp.float32,
                                minval=-k, maxval=k)
    return centers, bias, weight


if __name__ == "__main__":
    batch = 8
    input_size = 32
    feature_dim = 128
    output_size = 16
    feature_bd = 1.0
    temperature = 1.0
    steps = 1

    key = jax.random.PRNGKey(0)
    kx, kp, kxb = jax.random.split(key, 3)
    x = jax.random.normal(kx, (batch, input_size), jnp.float32)
    centers, bias, weight = make_raw_params(kp, input_size, feature_dim,
                                            output_size, feature_bd)

    def reference(xin):   # plain-JAX mirror of the torch forward
        feat = jnp.cos(xin @ centers + bias) / math.sqrt(feature_dim)
        logits = feat @ weight.T
        return jax.nn.softmax(logits / (temperature * math.sqrt(steps)), axis=1)

    # ---- f32 path (portable: v5e/v6e/v7x) ----
    c32, b32, w32 = prepare_params(centers, bias, weight, param_dtype=jnp.float32)
    out = linear_policy_forward(x, c32, b32, w32, output_size=output_size,
                                temperature=temperature, steps=steps)
    jax.block_until_ready(out)
    ref = reference(x)
    assert out.shape == (batch, output_size)
    assert jnp.allclose(out, ref, atol=5e-5, rtol=1e-4), "f32 mismatch vs reference"

    # ---- larger batch: exercises the multi-step parallel batch grid + padding ----
    xb = jax.random.normal(kxb, (200, input_size), jnp.float32)
    out_b = linear_policy_forward(xb, c32, b32, w32, output_size=output_size,
                                  temperature=temperature, steps=steps)
    jax.block_until_ready(out_b)
    assert out_b.shape == (200, output_size)
    assert jnp.allclose(out_b, reference(xb), atol=5e-5, rtol=1e-4), \
        "batched f32 mismatch vs reference"

    # ---- bf16 MXU-input path (v6e/v7x optimization; looser tolerance) ----
    cbf, bbf, wbf = prepare_params(centers, bias, weight, param_dtype=jnp.bfloat16)
    out_bf = linear_policy_forward(x, cbf, bbf, wbf, output_size=output_size,
                                   temperature=temperature, steps=steps,
                                   mxu_dtype=jnp.bfloat16)
    jax.block_until_ready(out_bf)
    assert jnp.allclose(out_bf, ref, atol=2e-2), "bf16 mismatch vs reference"

    print("KERNEL_OK")
</pallas_src>

<mosaic_0001>
module attributes {stable_mosaic.version = 11 : i64} {
  func.func @_linear_policy_kernel(%arg0: i32, %arg1: memref<8x32xf32, #tpu.memory_space<vmem>>, %arg2: memref<32x128xf32, #tpu.memory_space<vmem>>, %arg3: memref<1x128xf32, #tpu.memory_space<vmem>>, %arg4: memref<128x128xf32, #tpu.memory_space<vmem>>, %arg5: memref<8x128xf32, #tpu.memory_space<vmem>>) attributes {dimension_semantics = [#tpu.dimension_semantics<parallel>], iteration_bounds = array<i64: 1>, scalar_prefetch = 0 : i64, scratch_operands = 0 : i64, tpu.core_type = #tpu.core_type<tc>, window_params = [{transform_indices = @transform_0, window_bounds = array<i64: 8, 32>}, {pipeline_mode = #tpu.pipeline_mode<synchronous>, transform_indices = @transform_1, window_bounds = array<i64: 32, 128>}, {pipeline_mode = #tpu.pipeline_mode<synchronous>, transform_indices = @transform_2, window_bounds = array<i64: 1, 128>}, {pipeline_mode = #tpu.pipeline_mode<synchronous>, transform_indices = @transform_3, window_bounds = array<i64: 128, 128>}, {transform_indices = @transform_4, window_bounds = array<i64: 8, 128>}]} {
    %c0 = arith.constant 0 : index
    %c0_0 = arith.constant 0 : index
    %0 = vector.load %arg1[%c0, %c0_0] : memref<8x32xf32, #tpu.memory_space<vmem>>, vector<8x32xf32>
    %c0_1 = arith.constant 0 : index
    %c0_2 = arith.constant 0 : index
    %1 = vector.load %arg2[%c0_1, %c0_2] : memref<32x128xf32, #tpu.memory_space<vmem>>, vector<32x128xf32>
    %cst = arith.constant dense<0.000000e+00> : vector<8x128xf32>
    %2 = tpu.matmul %0, %1, %cst {dimension_numbers = #tpu.dot_dimension_numbers<[1], [0], [0], [1], [0, 0, 1, 1], [], []>} : vector<8x32xf32>, vector<32x128xf32>, vector<8x128xf32> -> vector<8x128xf32>
    %c0_3 = arith.constant 0 : index
    %c0_4 = arith.constant 0 : index
    %3 = vector.load %arg3[%c0_3, %c0_4] : memref<1x128xf32, #tpu.memory_space<vmem>>, vector<1x128xf32>
    %4 = vector.broadcast %3 : vector<1x128xf32> to vector<8x128xf32>
    %5 = arith.addf %2, %4 : vector<8x128xf32>
    %6 = math.cos %5 : vector<8x128xf32>
    %c0_5 = arith.constant 0 : index
    %c0_6 = arith.constant 0 : index
    %7 = vector.load %arg4[%c0_5, %c0_6] : memref<128x128xf32, #tpu.memory_space<vmem>>, vector<128x128xf32>
    %cst_7 = arith.constant dense<0.000000e+00> : vector<8x128xf32>
    %8 = tpu.matmul %6, %7, %cst_7 {dimension_numbers = #tpu.dot_dimension_numbers<[1], [0], [0], [1], [0, 0, 1, 1], [], []>} : vector<8x128xf32>, vector<128x128xf32>, vector<8x128xf32> -> vector<8x128xf32>
    %cst_8 = arith.constant 1.000000e+00 : f32
    %9 = vector.broadcast %cst_8 : f32 to vector<8x128xf32>
    %10 = arith.mulf %8, %9 : vector<8x128xf32>
    %11 = tpu.iota {dimensions = array<i32: 1>} : vector<8x128xi32>
    %c16_i32 = arith.constant 16 : i32
    %12 = vector.broadcast %c16_i32 : i32 to vector<8x128xi32>
    %13 = arith.cmpi slt, %11, %12 : vector<8x128xi32>
    %cst_9 = arith.constant -1.000000e+30 : f32
    %14 = vector.broadcast %cst_9 : f32 to vector<8x128xf32>
    %15 = arith.select %13, %10, %14 : vector<8x128xi1>, vector<8x128xf32>
    %cst_10 = arith.constant dense<0xFF800000> : vector<8xf32>
    %16 = vector.multi_reduction <maximumf>, %15, %cst_10 [1] : vector<8x128xf32> to vector<8xf32>
    %17 = vector.shape_cast %16 : vector<8xf32> to vector<8x1xf32>
    %18 = vector.broadcast %17 : vector<8x1xf32> to vector<8x128xf32>
    %19 = arith.subf %15, %18 : vector<8x128xf32>
    %20 = math.exp %19 : vector<8x128xf32>
    %cst_11 = arith.constant dense<0.000000e+00> : vector<8xf32>
    %21 = vector.multi_reduction <add>, %20, %cst_11 [1] : vector<8x128xf32> to vector<8xf32>
    %22 = vector.shape_cast %21 : vector<8xf32> to vector<8x1xf32>
    %23 = vector.broadcast %22 : vector<8x1xf32> to vector<8x128xf32>
    %24 = arith.divf %20, %23 : vector<8x128xf32>
    %c0_12 = arith.constant 0 : index
    %c0_13 = arith.constant 0 : index
    %25 = vector.load %arg5[%c0_12, %c0_13] : memref<8x128xf32, #tpu.memory_space<vmem>>, vector<8x128xf32>
    tpu.vector_store %arg5[%c0_12, %c0_13], %24 {strides = array<i32>} : memref<8x128xf32, #tpu.memory_space<vmem>>, vector<8x128xf32>,
    return
  }
  func.func @transform_0(%arg0: i32) -> (i32, i32) {
    %c0_i32 = arith.constant 0 : i32
    %c0_i32_0 = arith.constant 0 : i32
    return %arg0, %c0_i32 : i32, i32
  }
  func.func @transform_1(%arg0: i32) -> (i32, i32) {
    %c0_i32 = arith.constant 0 : i32
    %c0_i32_0 = arith.constant 0 : i32
    %c0_i32_1 = arith.constant 0 : i32
    return %c0_i32, %c0_i32_0 : i32, i32
  }
  func.func @transform_2(%arg0: i32) -> (i32, i32) {
    %c0_i32 = arith.constant 0 : i32
    %c0_i32_0 = arith.constant 0 : i32
    %c0_i32_1 = arith.constant 0 : i32
    return %c0_i32, %c0_i32_0 : i32, i32
  }
  func.func @transform_3(%arg0: i32) -> (i32, i32) {
    %c0_i32 = arith.constant 0 : i32
    %c0_i32_0 = arith.constant 0 : i32
    %c0_i32_1 = arith.constant 0 : i32
    return %c0_i32, %c0_i32_0 : i32, i32
  }
  func.func @transform_4(%arg0: i32) -> (i32, i32) {
    %c0_i32 = arith.constant 0 : i32
    %c0_i32_0 = arith.constant 0 : i32
    return %arg0, %c0_i32 : i32, i32
  }
}

</mosaic_0001>

<llo_original>
// kernel: tpu_custom_call.1
$region0: #{tpu_custom_call.1}
  #allocation0 [shape = 'u32[]', space=smem, size = 0x4, offset = 0x4, fixed_abs, tag = 'smem constant byte address 0x4 - core index']
  #allocation1 [shape = 'u32[144,128]{1,0:T(1,128)}', space=vmem, size = 0x12000, scoped, tag = 'internal scratch']
  %s0 = inlined_call_operand.hbm [shape: f32[8,32], index: 0, kind: input, shape index: {}]
  %s1 = inlined_call_operand.hbm [shape: f32[32,128], index: 1, kind: input, shape index: {}]
  %s2 = inlined_call_operand.vmem [shape: f32[1,128], index: 2, kind: input, shape index: {}]
  %s3 = inlined_call_operand.hbm [shape: f32[128,128], index: 3, kind: input, shape index: {}]
  %s4 = inlined_call_operand.hbm [shape: f32[8,128], index: 4, kind: output, shape index: {}]
  %s5 = sld [smem:[#allocation0]]
  $region38: #{tpu_custom_call.1} parent=0
    _
  %s7 = ssub.s32 1, %s5
  %s8 = scalar_select 0, %s7, %s5
  $region1: #{tpu_custom_call.1} parent=0
    #allocation2 [shape = 'u8[4096]{0}', space=vmem, size = 0x1000, scoped, tag = 'input window, operand 0, single buffered']
    #allocation3 [shape = 's32[1]{0}', space=sflag, size = 0x4, scoped, tag = 'scoped memory for tpu_custom_call.1']
    #allocation4 [shape = 's32[1]{0}', space=sflag, size = 0x4, scoped, tag = 'scoped memory for tpu_custom_call.1']
    #allocation5 [shape = 'u8[16384]{0}', space=vmem, size = 0x4000, scoped, tag = 'input window, operand 1, single buffered']
    #allocation6 [shape = 's32[1]{0}', space=sflag, size = 0x4, scoped, tag = 'scoped memory for tpu_custom_call.1']
    #allocation7 [shape = 'u8[65536]{0}', space=vmem, size = 0x10000, scoped, tag = 'input window, operand 3, single buffered']
    #allocation8 [shape = 'u8[4096]{0}', space=vmem, size = 0x1000, scoped, tag = 'output window, operand 0, single buffered']
    %9 = vsyncpa [#allocation3], 0
    %10 = vsyncpa [#allocation6], 0
    %11 = vsyncpa [#allocation4], 0
    // Predicated region
    $region2: #{tpu_custom_call.1} parent=1 // pred_check
      _
    $region3: #{tpu_custom_call.1} parent=1 // pred_check_branch
      %13 = sbr.rel (0) target = $region5
    $region4: #{tpu_custom_call.1} parent=1 // pred_region
      %s15 = ssub.s32 128, 128
      %16 = vsyncadd [#allocation3], %s15
      %s18 = sshll.u32 [#allocation2], 4
      %s19 = int_to_ptr.vmem [resolvable:$true] %s18
      %21 = dma.hbm_to_vmem [thread:$0]  %s0, 128, %s19, [#allocation3]
    $region5: #{tpu_custom_call.1} parent=1 // pred_fallthru
      _
    // Predicated region
    $region6: #{tpu_custom_call.1} parent=1 // pred_check
      _
    $region7: #{tpu_custom_call.1} parent=1 // pred_check_branch
      %23 = sbr.rel (0) target = $region9
    $region8: #{tpu_custom_call.1} parent=1 // pred_region
      %s25 = ssub.s32 512, 512
      %26 = vsyncadd [#allocation6], %s25
      %s27 = sshll.u32 [#allocation5], 4
      %s28 = int_to_ptr.vmem [resolvable:$true] %s27
      %33 = dma.hbm_to_vmem [thread:$0]  %s1, 512, %s28, [#allocation6], 128, 128, 8
    $region9: #{tpu_custom_call.1} parent=1 // pred_fallthru
      _
    // Predicated region
    $region10: #{tpu_custom_call.1} parent=1 // pred_check
      _
    $region11: #{tpu_custom_call.1} parent=1 // pred_check_branch
      %35 = sbr.rel (0) target = $region13
    $region12: #{tpu_custom_call.1} parent=1 // pred_region
      _
    $region13: #{tpu_custom_call.1} parent=1 // pred_fallthru
      _
    // Predicated region
    $region14: #{tpu_custom_call.1} parent=1 // pred_check
      _
    $region15: #{tpu_custom_call.1} parent=1 // pred_check_branch
      %37 = sbr.rel (0) target = $region17
    $region16: #{tpu_custom_call.1} parent=1 // pred_region
      %s39 = ssub.s32 2048, 2048
      %40 = vsyncadd [#allocation6], %s39
      %s41 = sshll.u32 [#allocation7], 4
      %s42 = int_to_ptr.vmem [resolvable:$true] %s41
      %47 = dma.hbm_to_vmem [thread:$0]  %s3, 2048, %s42, [#allocation6], 128, 128, 8
    $region17: #{tpu_custom_call.1} parent=1 // pred_fallthru
      _
    // Predicated region
    $region18: #{tpu_custom_call.1} parent=1 // pred_check
      _
    $region19: #{tpu_custom_call.1} parent=1 // pred_check_branch
      %49 = sbr.rel (0) target = $region21
    $region20: #{tpu_custom_call.1} parent=1 // pred_region
      %50 = dma.done [#allocation3], 128
    $region21: #{tpu_custom_call.1} parent=1 // pred_fallthru
      _
    // Predicated region
    $region22: #{tpu_custom_call.1} parent=1 // pred_check
      _
    $region23: #{tpu_custom_call.1} parent=1 // pred_check_branch
      %52 = sbr.rel (0) target = $region25
    $region24: #{tpu_custom_call.1} parent=1 // pred_region
      %53 = dma.done [#allocation6], 512
    $region25: #{tpu_custom_call.1} parent=1 // pred_fallthru
      _
    // Predicated region
    $region26: #{tpu_custom_call.1} parent=1 // pred_check
      _
    $region27: #{tpu_custom_call.1} parent=1 // pred_check_branch
      %55 = sbr.rel (0) target = $region29
    $region28: #{tpu_custom_call.1} parent=1 // pred_region
      %56 = dma.done [#allocation6], 2048
    $region29: #{tpu_custom_call.1} parent=1 // pred_fallthru
      _
    %v57 = vld [vmem:[#allocation2] sm:$0xff]
    %v58 = vld [vmem:[#allocation5] sm:$0xff]
    %v59 = vld [vmem:[#allocation5 + $0x8] sm:$0xff]
    %v60 = vld [vmem:[#allocation5 + $0x10] sm:$0xff]
    %v61 = vld [vmem:[#allocation5 + $0x18] sm:$0xff]
    %v62 = vld [vmem:[%s2] sm:$0x1]
    %v64 = vlaneseq
    %v65 = vshrl.u32 %v64, 7
    %v66 = vsub.s32 0, %v65
    %v67 = vrot.slane %v62, %v66
    %vm69 = vcmask 261120
    %v71 = vsel %vm69, %v57, 0
    %73 = vmatprep.subr.mxu0 0.0
    %74 = vmatpush1.msra.mxu0 %v58
    %75 = vmatprep.subr.mxu0 0.0
    %76 = vmatpush1.msra.mxu0 %v59
    %77 = vmatprep.subr.mxu0 0.0
    %78 = vmatpush1.msra.mxu0 %v60
    %79 = vmatprep.subr.mxu0 0.0
    %80 = vmatpush1.msra.mxu0 %v61
    %81 = vmatprep.subr.mxu0 0.0
    %82 = vmatpush1.msra.mxu0 0.0
    %83 = vmatprep.subr.mxu0 0.0
    %84 = vmatpush1.msra.mxu0 0.0
    %85 = vmatprep.subr.mxu0 0.0
    %86 = vmatpush1.msra.mxu0 0.0
    %87 = vmatprep.subr.mxu0 0.0
    %88 = vmatpush1.msra.mxu0 0.0
    %89 = vmatprep.subr.mxu0 0.0
    %90 = vmatpush1.msra.mxu0 0.0
    %91 = vmatprep.subr.mxu0 0.0
    %92 = vmatpush1.msra.mxu0 0.0
    %93 = vmatprep.subr.mxu0 0.0
    %94 = vmatpush1.msra.mxu0 0.0
    %95 = vmatprep.subr.mxu0 0.0
    %96 = vmatpush1.msra.mxu0 0.0
    %97 = vmatprep.subr.mxu0 0.0
    %98 = vmatpush1.msra.mxu0 0.0
    %99 = vmatprep.subr.mxu0 0.0
    %100 = vmatpush1.msra.mxu0 0.0
    %101 = vmatprep.subr.mxu0 0.0
    %102 = vmatpush1.msra.mxu0 0.0
    %103 = vmatprep.subr.mxu0 0.0
    %104 = vmatpush1.msra.mxu0 0.0
    %105 = vmatprep.subr.mxu0 0.0
    %106 = vmatpush1.msra.mxu0 0.0
    %107 = vmatprep.subr.mxu0 0.0
    %108 = vmatpush1.msra.mxu0 0.0
    %109 = vmatprep.subr.mxu0 0.0
    %110 = vmatpush1.msra.mxu0 0.0
    %111 = vmatprep.subr.mxu0 0.0
    %112 = vmatpush1.msra.mxu0 0.0
    %113 = vmatprep.subr.mxu0 0.0
    %114 = vmatpush1.msra.mxu0 0.0
    %115 = vmatprep.subr.mxu0 0.0
    %116 = vmatpush1.msra.mxu0 0.0
    %117 = vmatprep.subr.mxu0 0.0
    %118 = vmatpush1.msra.mxu0 0.0
    %119 = vmatprep.subr.mxu0 0.0
    %120 = vmatpush1.msra.mxu0 0.0
    %121 = vmatprep.subr.mxu0 0.0
    %122 = vmatpush1.msra.mxu0 0.0
    %123 = vmatprep.subr.mxu0 0.0
    %124 = vmatpush1.msra.mxu0 0.0
    %125 = vmatprep.subr.mxu0 0.0
    %126 = vmatpush1.msra.mxu0 0.0
    %127 = vmatprep.subr.mxu0 0.0
    %128 = vmatpush1.msra.mxu0 0.0
    %129 = vmatprep.subr.mxu0 0.0
    %130 = vmatpush1.msra.mxu0 0.0
    %131 = vmatprep.subr.mxu0 0.0
    %132 = vmatpush1.msra.mxu0 0.0
    %133 = vmatprep.subr.mxu0 0.0
    %134 = vmatpush1.msra.mxu0 0.0
    %135 = vmatprep.subr.mxu0 0.0
    %136 = vmatpush1.msra.mxu0 0.0
    %137 = vmatprep.mubr.f32.mxu0 0.0
    %138 = vmatmul.mubr.f32.gmra.mrb[0].mxu0 %v71
    %v139 = vpop.f32.mrb[0].mxu0
    %v140 = vadd.f32 %v67, %v139
    %v141 = vpop.f32.mrb[0].mxu0
    %142 = vdwg.mxu0
    %v143 = vand.u32 2147483647, %v140
    %vm144 = vcmp.le.f32.partialorder %v143, 0.7853982
    %vm145 = vcmp.lt.s32.totalorder %v140, 0
    %v146 = vand.u32 %v140, 2139095040
    %v147 = vshrl.u32 %v146, 23
    %v148 = vsub.s32 %v147, 127
    %v149 = vand.u32 2147483647, %v140
    %v150 = vand.u32 %v149, 8388607
    %v151 = vor.u32 %v150, 8388608
    %v152 = vsub.s32 0, %v151
    %v153 = vadd.s32 %v148, 1
    %vm154 = vcmp.gt.s32.totalorder %v153, 0
    %v155 = vsel %vm154, %v153, 0
    %v156 = vshrl.u32 %v155, 5
    %v157 = vand.u32 %v155, 31
    %v158 = vsub.s32 32, %v157
    %v159 = vshrl.u32 683565275, %v158
    %v160 = vshll.u32 683565275, %v157
    %v161 = vshrl.u32 2475754826, %v158
    %v162 = vor.u32 %v160, %v161
    %v163 = vshll.u32 2475754826, %v157
    %v164 = vshrl.u32 2131351028, %v158
    %v165 = vor.u32 %v163, %v164
    %v166 = vshll.u32 2131351028, %v157
    %v167 = vshrl.u32 2102212464, %v158
    %v168 = vor.u32 %v166, %v167
    %v169 = vshll.u32 2102212464, %v157
    %v170 = vshrl.u32 920167782, %v158
    %v171 = vor.u32 %v169, %v170
    %v172 = vshll.u32 920167782, %v157
    %v173 = vshrl.u32 1326507024, %v158
    %v174 = vor.u32 %v172, %v173
    %vm175 = vcmp.lt.s32.totalorder %v156, 1
    %vm176 = vcmp.lt.s32.totalorder %v156, 2
    %vm177 = vcmp.lt.s32.totalorder %v156, 3
    %vm178 = vcmp.lt.s32.totalorder %v156, 4
    %v179 = vsel %vm175, %v159, %v162
    %v180 = vsel %vm178, %v168, 2102212464
    %v181 = vsel %vm177, %v165, %v180
    %v182 = vsel %vm176, %v179, %v181
    %v183 = vsel %vm175, %v162, %v165
    %v184 = vsel %vm178, %v171, 920167782
    %v185 = vsel %vm177, %v168, %v184
    %v186 = vsel %vm176, %v183, %v185
    %v187 = vsel %vm175, %v165, %v168
    %v188 = vsel %vm178, %v174, 1326507024
    %v189 = vsel %vm177, %v171, %v188
    %v190 = vsel %vm176, %v187, %v189
    %v191 = vshll.u32 %v151, 8
    %v192 = vmul.u32.u64.compose %v191, %v190
    %v193 = vextract.low.u32 %v192
    %v194 = vextract.high.u32 %v192
    %v195 = vmul.u32.u64.compose %v191, %v186
    %v196 = vextract.low.u32 %v195
    %v197 = vextract.high.u32 %v195
    %v198 = vmul.u32 %v191, %v182
    %v199 = vadd.s32 %v194, %v196
    %vm200 = vc.u32 %v194, %v196
    %v201 = vadd.s32 %v197, 1
    %v202 = vsel %vm200, %v201, %v197
    %v203 = vadd.s32 %v198, %v202
    %v204 = vadd.s32 %v203, 536870912
    %v205 = vshrl.u32 %v204, 30
    %v206 = vshll.u32 %v205, 30
    %v207 = vsub.s32 %v203, %v206
    %vm208 = vcmp.lt.s32.totalorder %v207, 0
    %v209 = vsub.s32 0, %v207
    %v210 = vsel %vm208, %v209, %v207
    %v211 = vclz %v210
    %v212 = vsub.s32 %v211, 2
    %vm213 = vcmp.gt.s32.totalorder 0, %v212
    %v214 = vsel %vm213, 0, %v212
    %v215 = vsub.s32 32, %v214
    %v216 = vshll.u32 %v207, %v214
    %v217 = vshrl.u32 %v199, %v215
    %v218 = vor.u32 %v216, %v217
    %v219 = vsub.s32 4294967266, %v214
    %v220 = vadd.s32 %v219, 127
    %v221 = vshll.u32 %v220, 23
    %v222 = vor.u32 4788187, %v221
    %v223 = vand.u32 2147483647, %v222
    %v225 = vcvt.s32.f32 %v218
    %v226 = vmul.f32 %v225, %v223
    %v227 = vxor.u32 %v226, 2147483648
    %v228 = vsel %vm145, %v227, %v226
    %v229 = vsub.s32 4, %v205
    %v230 = vsel %vm145, %v229, %v205
    %v231 = vsel %vm144, %v140, %v228
    %v232 = vsel %vm144, 0, %v230
    %v233 = vcosq.f32.pop %v231
    %v234 = vsinq.f32.pop %v231
    %vm235 = vweird.f32 %v140
    %v236 = vand.u32 %v232, 3
    %vm237 = vcmp.lt.s32.totalorder %v236, 2
    %vm238 = vcmp.eq.s32.totalorder %v236, 0
    %v239 = vxor.u32 %v234, 2147483648
    %v240 = vsel %vm238, %v233, %v239
    %vm241 = vcmp.eq.s32.totalorder %v236, 2
    %v242 = vxor.u32 %v233, 2147483648
    %v243 = vsel %vm241, %v242, %v234
    %v244 = vsel %vm237, %v240, %v243
    %v245 = vsel %vm235, nan, %v244
    %v246 = vld [vmem:[#allocation7] sm:$0xff]
    %v247 = vld [vmem:[#allocation7 + $0x8] sm:$0xff]
    %v248 = vld [vmem:[#allocation7 + $0x10] sm:$0xff]
    %v249 = vld [vmem:[#allocation7 + $0x18] sm:$0xff]
    %v250 = vld [vmem:[#allocation7 + $0x20] sm:$0xff]
    %v251 = vld [vmem:[#allocation7 + $0x28] sm:$0xff]
    %v252 = vld [vmem:[#allocation7 + $0x30] sm:$0xff]
    %v253 = vld [vmem:[#allocation7 + $0x38] sm:$0xff]
    %v254 = vld [vmem:[#allocation7 + $0x40] sm:$0xff]
    %v255 = vld [vmem:[#allocation7 + $0x48] sm:$0xff]
    %v256 = vld [vmem:[#allocation7 + $0x50] sm:$0xff]
    %v257 = vld [vmem:[#allocation7 + $0x58] sm:$0xff]
    %v258 = vld [vmem:[#allocation7 + $0x60] sm:$0xff]
    %v259 = vld [vmem:[#allocation7 + $0x68] sm:$0xff]
    %v260 = vld [vmem:[#allocation7 + $0x70] sm:$0xff]
    %v261 = vld [vmem:[#allocation7 + $0x78] sm:$0xff]
    %262 = vmatprep.subr.mxu0 0.0
    %263 = vmatpush1.msra.mxu0 %v246
    %264 = vmatprep.subr.mxu0 0.0
    %265 = vmatpush1.msra.mxu0 %v247
    %266 = vmatprep.subr.mxu0 0.0
    %267 = vmatpush1.msra.mxu0 %v248
    %268 = vmatprep.subr.mxu0 0.0
    %269 = vmatpush1.msra.mxu0 %v249
    %270 = vmatprep.subr.mxu0 0.0
    %271 = vmatpush1.msra.mxu0 %v250
    %272 = vmatprep.subr.mxu0 0.0
    %273 = vmatpush1.msra.mxu0 %v251
    %274 = vmatprep.subr.mxu0 0.0
    %275 = vmatpush1.msra.mxu0 %v252
    %276 = vmatprep.subr.mxu0 0.0
    %277 = vmatpush1.msra.mxu0 %v253
    %278 = vmatprep.subr.mxu0 0.0
    %279 = vmatpush1.msra.mxu0 %v254
    %280 = vmatprep.subr.mxu0 0.0
    %281 = vmatpush1.msra.mxu0 %v255
    %282 = vmatprep.subr.mxu0 0.0
    %283 = vmatpush1.msra.mxu0 %v256
    %284 = vmatprep.subr.mxu0 0.0
    %285 = vmatpush1.msra.mxu0 %v257
    %286 = vmatprep.subr.mxu0 0.0
    %287 = vmatpush1.msra.mxu0 %v258
    %288 = vmatprep.subr.mxu0 0.0
    %289 = vmatpush1.msra.mxu0 %v259
    %290 = vmatprep.subr.mxu0 0.0
    %291 = vmatpush1.msra.mxu0 %v260
    %292 = vmatprep.subr.mxu0 0.0
    %293 = vmatpush1.msra.mxu0 %v261
    %294 = vmatprep.subr.mxu0 0.0
    %295 = vmatpush1.msra.mxu0 0.0
    %296 = vmatprep.subr.mxu0 0.0
    %297 = vmatpush1.msra.mxu0 0.0
    %298 = vmatprep.subr.mxu0 0.0
    %299 = vmatpush1.msra.mxu0 0.0
    %300 = vmatprep.subr.mxu0 0.0
    %301 = vmatpush1.msra.mxu0 0.0
    %302 = vmatprep.subr.mxu0 0.0
    %303 = vmatpush1.msra.mxu0 0.0
    %304 = vmatprep.subr.mxu0 0.0
    %305 = vmatpush1.msra.mxu0 0.0
    %306 = vmatprep.subr.mxu0 0.0
    %307 = vmatpush1.msra.mxu0 0.0
    %308 = vmatprep.subr.mxu0 0.0
    %309 = vmatpush1.msra.mxu0 0.0
    %310 = vmatprep.subr.mxu0 0.0
    %311 = vmatpush1.msra.mxu0 0.0
    %312 = vmatprep.subr.mxu0 0.0
    %313 = vmatpush1.msra.mxu0 0.0
    %314 = vmatprep.subr.mxu0 0.0
    %315 = vmatpush1.msra.mxu0 0.0
    %316 = vmatprep.subr.mxu0 0.0
    %317 = vmatpush1.msra.mxu0 0.0
    %318 = vmatprep.subr.mxu0 0.0
    %319 = vmatpush1.msra.mxu0 0.0
    %320 = vmatprep.subr.mxu0 0.0
    %321 = vmatpush1.msra.mxu0 0.0
    %322 = vmatprep.subr.mxu0 0.0
    %323 = vmatpush1.msra.mxu0 0.0
    %324 = vmatprep.subr.mxu0 0.0
    %325 = vmatpush1.msra.mxu0 0.0
    %326 = vmatprep.mubr.f32.mxu0 0.0
    %327 = vmatmul.mubr.f32.gmra.mrb[0].mxu0 %v245
    %v328 = vpop.f32.mrb[0].mxu0
    %v329 = vadd.f32 0.0, %v328
    %v330 = vpop.f32.mrb[0].mxu0
    %331 = vdwg.mxu0
    %v332 = vlaneseq
    %v333 = vand.u32 %v332, 127
    %vm334 = vcmp.lt.s32.totalorder %v333, 16
    %v335 = vsel %vm334, %v329, -1e+30
    %336 = vmax.xlane.f32.xlu0 %v335
    %v337 = vpop.xlane.xlu0 %336
    %v338 = vsub.f32 %v335, %v337
    %v339 = vmul.f32 %v338, 1.442695
    %v340 = vpow.pop %v339
    %341 = vadd.xlane.f32.xlu0 %v340
    %v342 = vpop.xlane.xlu0 %341
    %v343 = vrcp.pop %v342
    %v344 = vmul.f32 %v340, %v343
    %345 = vst [vmem:[#allocation8] sm:$0xff] %v344
    // Predicated region
    $region30: #{tpu_custom_call.1} parent=1 // pred_check
      _
    $region31: #{tpu_custom_call.1} parent=1 // pred_check_branch
      %347 = sbr.rel (0) target = $region33
    $region32: #{tpu_custom_call.1} parent=1 // pred_region
      %s349 = ssub.s32 128, 128
      %350 = vsyncadd [#allocation4], %s349
      %s352 = sshll.u32 [#allocation8], 4
      %s353 = int_to_ptr.vmem [resolvable:$true] %s352
      %355 = dma.vmem_to_hbm [thread:$0]  %s353, 128, %s4, [#allocation4]
    $region33: #{tpu_custom_call.1} parent=1 // pred_fallthru
      _
    // Predicated region
    $region34: #{tpu_custom_call.1} parent=1 // pred_check
      _
    $region35: #{tpu_custom_call.1} parent=1 // pred_check_branch
      %357 = sbr.rel (0) target = $region37
    $region36: #{tpu_custom_call.1} parent=1 // pred_region
      %358 = dma.done [#allocation4], 128
    $region37: #{tpu_custom_call.1} parent=1 // pred_fallthru
      _
    %359 = vsyncpa [#allocation3], 1
    %360 = vsyncpa [#allocation6], 1
    %361 = vsyncpa [#allocation4], 1

</llo_original>
